<compile_context>
chip_gen: v5e
topology: v5e:2x2
jax: 0.10.0
libtpu: 0.0.40
codegen_flags: <defaults>
</compile_context>

<pallas_src>
import jax
import jax.numpy as jnp
from jax import lax
from jax.experimental import pallas as pl
from jax.experimental.pallas import tpu as pltpu

P_DROP = 0.2
_KEEP_SCALE = 1.0 / (1.0 - P_DROP)
# keep iff bits >= threshold  ->  P(keep) = 1 - P_DROP (to within 2^-32)
_DROP_THRESHOLD = int(round(P_DROP * (1 << 32)))  # 858993459


def _round_up(x, m):
    return ((x + m - 1) // m) * m


def _tile_plan(batch, d_in, d_out):
    """Padded sizes + tile sizes (lane dims multiple of 128, sublanes of 8)."""
    k_pad = _round_up(d_in, 128)
    tm = min(256, _round_up(batch, 8))
    m_pad = _round_up(batch, tm)
    tn = min(256, _round_up(d_out, 128))
    n_pad = _round_up(d_out, tn)
    return m_pad, k_pad, n_pad, tm, tn


def _mcc_kernel(x_ref, bits_ref, w_ref, b_ref, o_ref):
    # x_ref:(TM,K) bits_ref:(TM,K) uint32  w_ref:(TN,K)  b_ref:(1,TN)  o_ref:(TM,TN)
    x = x_ref[...]
    keep = bits_ref[...] >= jnp.uint32(_DROP_THRESHOLD)
    x_drop = jnp.where(keep, x * jnp.asarray(_KEEP_SCALE, x.dtype),
                       jnp.zeros((), x.dtype))
    # y = dropout(x) @ W.T  (contract last dim of both operands; avoids any
    # weight transpose).  Operands stay in the input dtype, f32 accumulation.
    y = lax.dot_general(
        x_drop, w_ref[...],
        dimension_numbers=(((1,), (1,)), ((), ())),
        preferred_element_type=jnp.float32)
    o_ref[...] = (y + b_ref[...].astype(jnp.float32)).astype(o_ref.dtype)


def mcc_forward(x, weight, bias, rng_key):
    """dropout(p=0.2) -> Linear.  x:(B,Din), weight:(Dout,Din), bias:(Dout,)."""
    batch, d_in = x.shape
    d_out = weight.shape[0]
    m_pad, k_pad, n_pad, tm, tn = _tile_plan(batch, d_in, d_out)

    # Lane-dense padding (zeros contribute nothing to the matmul).
    x_p = jnp.pad(x, ((0, m_pad - batch), (0, k_pad - d_in)))
    w_p = jnp.pad(weight, ((0, n_pad - d_out), (0, k_pad - d_in)))
    b_p = jnp.pad(bias, (0, n_pad - d_out)).reshape(1, n_pad)
    # Dropout randomness: raw uint32 bits, one per x element (per-tile
    # independence comes for free since each tile reads its own slice).
    bits = jax.random.bits(rng_key, (m_pad, k_pad), dtype=jnp.uint32)

    grid = (m_pad // tm, n_pad // tn)
    itemsize = jnp.dtype(x.dtype).itemsize
    cost = pl.CostEstimate(
        flops=2 * m_pad * k_pad * n_pad,
        transcendentals=0,
        bytes_accessed=(m_pad * k_pad * itemsize        # x
                        + m_pad * k_pad * 4             # bits
                        + n_pad * k_pad * itemsize      # weight
                        + n_pad * itemsize              # bias
                        + m_pad * n_pad * itemsize))    # out

    # TODO(synk): tile the K (input_dim) axis with an f32 VMEM accumulator and
    # a per-(m,k)-tile bits slice if input_dim grows beyond a few thousand.
    out_p = pl.pallas_call(
        _mcc_kernel,
        out_shape=jax.ShapeDtypeStruct((m_pad, n_pad), x.dtype),
        grid=grid,
        in_specs=[
            pl.BlockSpec((tm, k_pad), lambda i, j: (i, 0)),   # x tile
            pl.BlockSpec((tm, k_pad), lambda i, j: (i, 0)),   # dropout bits
            pl.BlockSpec((tn, k_pad), lambda i, j: (j, 0)),   # weight tile
            pl.BlockSpec((1, tn), lambda i, j: (0, j)),       # bias tile
        ],
        out_specs=pl.BlockSpec((tm, tn), lambda i, j: (i, j)),
        compiler_params=pltpu.CompilerParams(
            dimension_semantics=("parallel", "parallel")),
        cost_estimate=cost,
    )(x_p, bits, w_p, b_p)

    return out_p[:batch, :d_out]


def mcc_reference(x, weight, bias, rng_key):
    """Pure-JAX reference using the identical dropout bits."""
    batch, d_in = x.shape
    d_out = weight.shape[0]
    m_pad, k_pad, *_ = _tile_plan(batch, d_in, d_out)
    bits = jax.random.bits(rng_key, (m_pad, k_pad), dtype=jnp.uint32)[:batch, :d_in]
    keep = bits >= jnp.uint32(_DROP_THRESHOLD)
    x_drop = jnp.where(keep, x * _KEEP_SCALE, 0.0)
    return x_drop @ weight.T + bias


if __name__ == "__main__":
    batch, input_dim, output_dim = 8, 32, 16

    key = jax.random.PRNGKey(0)
    kx, kw, kb, kdrop = jax.random.split(key, 4)

    # nn.Linear-style init: uniform in [-1/sqrt(in_features), 1/sqrt(in_features)].
    bound = 1.0 / (input_dim ** 0.5)
    weight = jax.random.uniform(kw, (output_dim, input_dim), jnp.float32,
                                minval=-bound, maxval=bound)
    bias = jax.random.uniform(kb, (output_dim,), jnp.float32,
                              minval=-bound, maxval=bound)
    x = jax.random.normal(kx, (batch, input_dim), jnp.float32)

    out = mcc_forward(x, weight, bias, kdrop)
    jax.block_until_ready(out)

    ref = mcc_reference(x, weight, bias, kdrop)

    assert out.shape == (batch, output_dim)
    assert bool(jnp.all(jnp.isfinite(out)))
    assert bool(jnp.allclose(out, ref, atol=1e-5, rtol=1e-5))
    print("KERNEL_OK")
</pallas_src>

<mosaic_0001>
module attributes {stable_mosaic.version = 11 : i64} {
  func.func @_mcc_kernel(%arg0: i32, %arg1: i32, %arg2: memref<8x128xf32, #tpu.memory_space<vmem>>, %arg3: memref<8x128xi32, #tpu.memory_space<vmem>>, %arg4: memref<128x128xf32, #tpu.memory_space<vmem>>, %arg5: memref<1x128xf32, #tpu.memory_space<vmem>>, %arg6: memref<8x128xf32, #tpu.memory_space<vmem>>) attributes {dimension_semantics = [#tpu.dimension_semantics<parallel>, #tpu.dimension_semantics<parallel>], iteration_bounds = array<i64: 1, 1>, scalar_prefetch = 0 : i64, scratch_operands = 0 : i64, tpu.core_type = #tpu.core_type<tc>, window_params = [{transform_indices = @transform_0, window_bounds = array<i64: 8, 128>}, {transform_indices = @transform_1, window_bounds = array<i64: 8, 128>}, {transform_indices = @transform_2, window_bounds = array<i64: 128, 128>}, {transform_indices = @transform_3, window_bounds = array<i64: 1, 128>}, {transform_indices = @transform_4, window_bounds = array<i64: 8, 128>}]} {
    %c0 = arith.constant 0 : index
    %c0_0 = arith.constant 0 : index
    %0 = vector.load %arg2[%c0, %c0_0] : memref<8x128xf32, #tpu.memory_space<vmem>>, vector<8x128xf32>
    %c0_1 = arith.constant 0 : index
    %c0_2 = arith.constant 0 : index
    %1 = vector.load %arg3[%c0_1, %c0_2] : memref<8x128xi32, #tpu.memory_space<vmem>>, vector<8x128xi32>
    %c858993459_i32 = arith.constant 858993459 : i32
    %2 = vector.broadcast %c858993459_i32 : i32 to vector<8x128xi32>
    %3 = arith.cmpi uge, %1, %2 : vector<8x128xi32>
    %cst = arith.constant 1.250000e+00 : f32
    %4 = vector.broadcast %cst : f32 to vector<8x128xf32>
    %5 = arith.mulf %0, %4 : vector<8x128xf32>
    %cst_3 = arith.constant 0.000000e+00 : f32
    %6 = vector.broadcast %cst_3 : f32 to vector<8x128xf32>
    %7 = arith.select %3, %5, %6 : vector<8x128xi1>, vector<8x128xf32>
    %c0_4 = arith.constant 0 : index
    %c0_5 = arith.constant 0 : index
    %8 = vector.load %arg4[%c0_4, %c0_5] : memref<128x128xf32, #tpu.memory_space<vmem>>, vector<128x128xf32>
    %cst_6 = arith.constant dense<0.000000e+00> : vector<8x128xf32>
    %9 = tpu.matmul %7, %8, %cst_6 {dimension_numbers = #tpu.dot_dimension_numbers<[1], [1], [0], [0], [0, 0, 1, 0], [], []>} : vector<8x128xf32>, vector<128x128xf32>, vector<8x128xf32> -> vector<8x128xf32>
    %c0_7 = arith.constant 0 : index
    %c0_8 = arith.constant 0 : index
    %10 = vector.load %arg5[%c0_7, %c0_8] : memref<1x128xf32, #tpu.memory_space<vmem>>, vector<1x128xf32>
    %11 = vector.broadcast %10 : vector<1x128xf32> to vector<8x128xf32>
    %12 = arith.addf %9, %11 : vector<8x128xf32>
    %c0_9 = arith.constant 0 : index
    %c0_10 = arith.constant 0 : index
    %13 = vector.load %arg6[%c0_9, %c0_10] : memref<8x128xf32, #tpu.memory_space<vmem>>, vector<8x128xf32>
    tpu.vector_store %arg6[%c0_9, %c0_10], %12 {strides = array<i32>} : memref<8x128xf32, #tpu.memory_space<vmem>>, vector<8x128xf32>,
    return
  }
  func.func @transform_0(%arg0: i32, %arg1: i32) -> (i32, i32) {
    %c0_i32 = arith.constant 0 : i32
    %c0_i32_0 = arith.constant 0 : i32
    return %arg0, %c0_i32 : i32, i32
  }
  func.func @transform_1(%arg0: i32, %arg1: i32) -> (i32, i32) {
    %c0_i32 = arith.constant 0 : i32
    %c0_i32_0 = arith.constant 0 : i32
    return %arg0, %c0_i32 : i32, i32
  }
  func.func @transform_2(%arg0: i32, %arg1: i32) -> (i32, i32) {
    %c0_i32 = arith.constant 0 : i32
    %c0_i32_0 = arith.constant 0 : i32
    return %arg1, %c0_i32 : i32, i32
  }
  func.func @transform_3(%arg0: i32, %arg1: i32) -> (i32, i32) {
    %c0_i32 = arith.constant 0 : i32
    %c0_i32_0 = arith.constant 0 : i32
    return %c0_i32, %arg1 : i32, i32
  }
  func.func @transform_4(%arg0: i32, %arg1: i32) -> (i32, i32) {
    %c0_i32 = arith.constant 0 : i32
    return %arg0, %arg1 : i32, i32
  }
}

</mosaic_0001>

<llo_original>
// kernel: tpu_custom_call.1
$region0: #{tpu_custom_call.1}
  #allocation0 [shape = 'u32[]', space=smem, size = 0x4, offset = 0x4, fixed_abs, tag = 'smem constant byte address 0x4 - core index']
  #allocation1 [shape = 'u32[72,128]{1,0:T(1,128)}', space=vmem, size = 0x9000, scoped, tag = 'internal scratch']
  %s0 = inlined_call_operand.hbm [shape: f32[8,128], index: 0, kind: input, shape index: {}]
  %s1 = inlined_call_operand.hbm [shape: u32[8,128], index: 1, kind: input, shape index: {}]
  %s2 = inlined_call_operand.hbm [shape: f32[128,128], index: 2, kind: input, shape index: {}]
  %s3 = inlined_call_operand.vmem [shape: f32[1,128], index: 3, kind: input, shape index: {}]
  %s4 = inlined_call_operand.hbm [shape: f32[8,128], index: 4, kind: output, shape index: {}]
  %s5 = sld [smem:[#allocation0]]
  $region38: #{tpu_custom_call.1} parent=0
    _
  %s7 = ssub.s32 1, %s5
  %s8 = scalar_select 0, %s7, %s5
  $region1: #{tpu_custom_call.1} parent=0
    #allocation2 [shape = 'u8[4096]{0}', space=vmem, size = 0x1000, scoped, tag = 'input window, operand 0, single buffered']
    #allocation3 [shape = 's32[1]{0}', space=sflag, size = 0x4, scoped, tag = 'scoped memory for tpu_custom_call.1']
    #allocation4 [shape = 's32[1]{0}', space=sflag, size = 0x4, scoped, tag = 'scoped memory for tpu_custom_call.1']
    #allocation5 [shape = 'u8[4096]{0}', space=vmem, size = 0x1000, scoped, tag = 'input window, operand 1, single buffered']
    #allocation6 [shape = 's32[1]{0}', space=sflag, size = 0x4, scoped, tag = 'scoped memory for tpu_custom_call.1']
    #allocation7 [shape = 'u8[65536]{0}', space=vmem, size = 0x10000, scoped, tag = 'input window, operand 2, single buffered']
    #allocation8 [shape = 'u8[4096]{0}', space=vmem, size = 0x1000, scoped, tag = 'output window, operand 0, single buffered']
    %9 = vsyncpa [#allocation3], 0
    %10 = vsyncpa [#allocation6], 0
    %11 = vsyncpa [#allocation4], 0
    // Predicated region
    $region2: #{tpu_custom_call.1} parent=1 // pred_check
      _
    $region3: #{tpu_custom_call.1} parent=1 // pred_check_branch
      %13 = sbr.rel (0) target = $region5
    $region4: #{tpu_custom_call.1} parent=1 // pred_region
      %15 = vsyncadd [#allocation3], 0
      %s17 = sshll.u32 %s0, 4
      %s18 = int_to_ptr.hbm [resolvable:$true] %s17
      %s19 = sshll.u32 [#allocation2], 4
      %s20 = int_to_ptr.vmem [resolvable:$true] %s19
      %22 = dma.hbm_to_vmem [thread:$0]  %s18, 128, %s20, [#allocation3]
    $region5: #{tpu_custom_call.1} parent=1 // pred_fallthru
      _
    // Predicated region
    $region6: #{tpu_custom_call.1} parent=1 // pred_check
      _
    $region7: #{tpu_custom_call.1} parent=1 // pred_check_branch
      %24 = sbr.rel (0) target = $region9
    $region8: #{tpu_custom_call.1} parent=1 // pred_region
      %26 = vsyncadd [#allocation6], 0
      %s28 = sshll.u32 %s1, 4
      %s29 = int_to_ptr.hbm [resolvable:$true] %s28
      %s30 = sshll.u32 [#allocation5], 4
      %s31 = int_to_ptr.vmem [resolvable:$true] %s30
      %33 = dma.hbm_to_vmem [thread:$0]  %s29, 128, %s31, [#allocation6]
    $region9: #{tpu_custom_call.1} parent=1 // pred_fallthru
      _
    // Predicated region
    $region10: #{tpu_custom_call.1} parent=1 // pred_check
      _
    $region11: #{tpu_custom_call.1} parent=1 // pred_check_branch
      %35 = sbr.rel (0) target = $region13
    $region12: #{tpu_custom_call.1} parent=1 // pred_region
      %37 = vsyncadd [#allocation6], 0
      %s38 = sshll.u32 %s2, 4
      %s39 = int_to_ptr.hbm [resolvable:$true] %s38
      %s40 = sshll.u32 [#allocation7], 4
      %s41 = int_to_ptr.vmem [resolvable:$true] %s40
      %46 = dma.hbm_to_vmem [thread:$0]  %s39, 2048, %s41, [#allocation6], 128, 128, 8
    $region13: #{tpu_custom_call.1} parent=1 // pred_fallthru
      _
    // Predicated region
    $region14: #{tpu_custom_call.1} parent=1 // pred_check
      _
    $region15: #{tpu_custom_call.1} parent=1 // pred_check_branch
      %48 = sbr.rel (0) target = $region17
    $region16: #{tpu_custom_call.1} parent=1 // pred_region
      _
    $region17: #{tpu_custom_call.1} parent=1 // pred_fallthru
      _
    // Predicated region
    $region18: #{tpu_custom_call.1} parent=1 // pred_check
      _
    $region19: #{tpu_custom_call.1} parent=1 // pred_check_branch
      %50 = sbr.rel (0) target = $region21
    $region20: #{tpu_custom_call.1} parent=1 // pred_region
      %52 = dma.done [#allocation3], 128
    $region21: #{tpu_custom_call.1} parent=1 // pred_fallthru
      _
    // Predicated region
    $region22: #{tpu_custom_call.1} parent=1 // pred_check
      _
    $region23: #{tpu_custom_call.1} parent=1 // pred_check_branch
      %54 = sbr.rel (0) target = $region25
    $region24: #{tpu_custom_call.1} parent=1 // pred_region
      %56 = dma.done [#allocation6], 128
    $region25: #{tpu_custom_call.1} parent=1 // pred_fallthru
      _
    // Predicated region
    $region26: #{tpu_custom_call.1} parent=1 // pred_check
      _
    $region27: #{tpu_custom_call.1} parent=1 // pred_check_branch
      %58 = sbr.rel (0) target = $region29
    $region28: #{tpu_custom_call.1} parent=1 // pred_region
      %60 = dma.done [#allocation6], 2048
    $region29: #{tpu_custom_call.1} parent=1 // pred_fallthru
      _
    %v61 = vld [vmem:[#allocation2] sm:$0xff]
    %v62 = vld [vmem:[#allocation5] sm:$0xff]
    %v63 = vadd.s32 %v62, 2147483648
    %vm65 = vcmp.ge.s32.totalorder %v63, 3006477107
    %v66 = vmul.f32 %v61, 1.25
    %v67 = vsel %vm65, %v66, 0.0
    %v68 = vld [vmem:[#allocation7] sm:$0xff]
    %v69 = vld [vmem:[#allocation7 + $0x8] sm:$0xff]
    %v70 = vld [vmem:[#allocation7 + $0x10] sm:$0xff]
    %v71 = vld [vmem:[#allocation7 + $0x18] sm:$0xff]
    %v72 = vld [vmem:[#allocation7 + $0x20] sm:$0xff]
    %v73 = vld [vmem:[#allocation7 + $0x28] sm:$0xff]
    %v74 = vld [vmem:[#allocation7 + $0x30] sm:$0xff]
    %v75 = vld [vmem:[#allocation7 + $0x38] sm:$0xff]
    %v76 = vld [vmem:[#allocation7 + $0x40] sm:$0xff]
    %v77 = vld [vmem:[#allocation7 + $0x48] sm:$0xff]
    %v78 = vld [vmem:[#allocation7 + $0x50] sm:$0xff]
    %v79 = vld [vmem:[#allocation7 + $0x58] sm:$0xff]
    %v80 = vld [vmem:[#allocation7 + $0x60] sm:$0xff]
    %v81 = vld [vmem:[#allocation7 + $0x68] sm:$0xff]
    %v82 = vld [vmem:[#allocation7 + $0x70] sm:$0xff]
    %v83 = vld [vmem:[#allocation7 + $0x78] sm:$0xff]
    %v84 = vld [vmem:[%s3] sm:$0x1]
    %v86 = vperm.slane %v84, 0
    %88 = vmatpush.xpose.msra.mxu0 %v83
    %89 = vmatpush.xpose.msra.mxu0 %v82
    %90 = vmatpush.xpose.msra.mxu0 %v81
    %91 = vmatpush.xpose.msra.mxu0 %v80
    %92 = vmatpush.xpose.msra.mxu0 %v79
    %93 = vmatpush.xpose.msra.mxu0 %v78
    %94 = vmatpush.xpose.msra.mxu0 %v77
    %95 = vmatpush.xpose.msra.mxu0 %v76
    %96 = vmatpush.xpose.msra.mxu0 %v75
    %97 = vmatpush.xpose.msra.mxu0 %v74
    %98 = vmatpush.xpose.msra.mxu0 %v73
    %99 = vmatpush.xpose.msra.mxu0 %v72
    %100 = vmatpush.xpose.msra.mxu0 %v71
    %101 = vmatpush.xpose.msra.mxu0 %v70
    %102 = vmatpush.xpose.msra.mxu0 %v69
    %103 = vmatpush.xpose.msra.mxu0 %v68
    %104 = vmatmul.f32.gmra.mxu0 %v67
    %v105 = vpop.f32.mrf.mxu0
    %v106 = vadd.f32 %v86, %v105
    %107 = vdwg.mxu0
    %108 = vst [vmem:[#allocation8] sm:$0xff] %v106
    // Predicated region
    $region30: #{tpu_custom_call.1} parent=1 // pred_check
      _
    $region31: #{tpu_custom_call.1} parent=1 // pred_check_branch
      %110 = sbr.rel (0) target = $region33
    $region32: #{tpu_custom_call.1} parent=1 // pred_region
      %112 = vsyncadd [#allocation4], 0
      %s114 = sshll.u32 [#allocation8], 4
      %s115 = int_to_ptr.vmem [resolvable:$true] %s114
      %s116 = sshll.u32 %s4, 4
      %s117 = int_to_ptr.hbm [resolvable:$true] %s116
      %119 = dma.vmem_to_hbm [thread:$0]  %s115, 128, %s117, [#allocation4]
    $region33: #{tpu_custom_call.1} parent=1 // pred_fallthru
      _
    // Predicated region
    $region34: #{tpu_custom_call.1} parent=1 // pred_check
      _
    $region35: #{tpu_custom_call.1} parent=1 // pred_check_branch
      %121 = sbr.rel (0) target = $region37
    $region36: #{tpu_custom_call.1} parent=1 // pred_region
      %123 = dma.done [#allocation4], 128
    $region37: #{tpu_custom_call.1} parent=1 // pred_fallthru
      _
    %124 = vsyncpa [#allocation3], 1
    %125 = vsyncpa [#allocation6], 1
    %126 = vsyncpa [#allocation4], 1

</llo_original>
